<compile_context>
chip_gen: v7x
topology: tpu7x:2x2x1
jax: 0.10.0
libtpu: 0.0.40
codegen_flags: <defaults>
</compile_context>

<pallas_src>
from functools import partial

import jax
import jax.numpy as jnp
from jax import lax
from jax.experimental import pallas as pl
from jax.experimental.pallas import tpu as pltpu


def _fused_kernel(x_ref, *refs, n_layers):
    # refs layout:
    #   refs[0 .. n_layers-1] : w_i  (Din_i, Dout_i), pre-transposed
    #   refs[n_layers]        : bf   (n_layers+1, max_dout)
    #                           rows 0..n-1 = per-layer bias (zero-padded),
    #                           row n       = last-layer factor (zero-padded)
    #   refs[n_layers+1]      : out  (B, Dout_last)
    w_refs = refs[:n_layers]
    bf_ref = refs[n_layers]
    o_ref = refs[n_layers + 1]

    B = x_ref.shape[0]
    # Ones-row scaled by 1/B: batch-mean via a tiny MXU matmul instead of an
    # XLU sublane reduction (hoisted out of the layer loop).
    inv_b = jnp.full((1, B), 1.0 / B, dtype=jnp.float32)

    h = x_ref[...]
    for i in range(n_layers):
        w = w_refs[i][...]
        dout = w.shape[1]

        # Linear (no bias) on the MXU, f32 accumulation.
        h = jnp.dot(h, w, preferred_element_type=jnp.float32)

        # BatchNorm over batch axis (biased variance, eps=1e-5, affine=False).
        # Stats on the MXU: mean = (1/B)*ones @ h ; var = (1/B)*ones @ (hc*hc).
        mean = jnp.dot(inv_b, h, preferred_element_type=jnp.float32)
        hc = h - mean
        var = jnp.dot(inv_b, hc * hc, preferred_element_type=jnp.float32)
        h = hc * lax.rsqrt(var + 1e-5)

        b = bf_ref[i : i + 1, :dout]  # (1, dout)
        if i == n_layers - 1:
            f = bf_ref[n_layers : n_layers + 1, :dout]  # (1, dout)
            z = (h + b) * f
            z = z - jnp.max(z, axis=1, keepdims=True)
            e = jnp.exp(z)
            denom = jnp.sum(e, axis=1, keepdims=True)
            # Exact divide: denom is (B,1); approx reciprocal buys nothing and
            # costs numerics (and broke row normalization).
            o_ref[...] = (e / denom).astype(o_ref.dtype)
        else:
            h = jnp.maximum(h + b, 0.0)


def ladder_mlp_clear(x, params):
    """clear_path(x) with a single input; x is any (B, ...) tensor.

    `params` is a list of (w_t, bias, factor) with w_t of shape (Din, Dout),
    bias/factor of shape (1, Dout).  Only the last layer's factor is used.
    """
    B = x.shape[0]
    h = x.reshape(B, -1).astype(jnp.float32)
    n_layers = len(params)
    max_dout = max(w_t.shape[1] for w_t, _, _ in params)

    # Pack all biases + last-layer factor into ONE operand (fewer DMAs).
    rows = []
    for w_t, bias, _ in params:
        dout = w_t.shape[1]
        rows.append(jnp.pad(bias.reshape(1, dout), ((0, 0), (0, max_dout - dout))))
    last_factor = params[-1][2].reshape(1, -1)
    rows.append(
        jnp.pad(last_factor, ((0, 0), (0, max_dout - last_factor.shape[1])))
    )
    bf = jnp.concatenate(rows, axis=0).astype(jnp.float32)

    args = [h] + [w_t for w_t, _, _ in params] + [bf]

    # Whole-array VMEM residency: no block_shape/index_map, no pipeline
    # double-buffering for a single-step (gridless) call.
    vmem_spec = lambda: pl.BlockSpec(memory_space=pltpu.MemorySpace.VMEM)
    in_specs = [vmem_spec() for _ in args]

    d_out = params[-1][0].shape[1]
    out_shape = jax.ShapeDtypeStruct((B, d_out), jnp.float32)

    return pl.pallas_call(
        partial(_fused_kernel, n_layers=n_layers),
        out_shape=out_shape,
        in_specs=in_specs,
        out_specs=vmem_spec(),
    )(*args)


def init_params(key, input_dim, num_neurons):
    """Deterministic parameter init matching Ladder_MLP.__init__."""
    dims_in = [input_dim] + num_neurons[:-1]
    params = []
    for din, dout in zip(dims_in, num_neurons):
        key, sub = jax.random.split(key)
        # nn.init.normal_(weight, std=weight.shape[0]**-0.5); weight is (dout, din)
        w = jax.random.normal(sub, (dout, din), dtype=jnp.float32) * (dout ** -0.5)
        bias = jnp.zeros((1, dout), dtype=jnp.float32)
        factor = jnp.ones((1, dout), dtype=jnp.float32)
        params.append((w.T, bias, factor))  # store transposed (din, dout)
    return params


def _reference(x, params):
    B = x.shape[0]
    h = x.reshape(B, -1).astype(jnp.float32)
    n = len(params)
    for i, (w_t, bias, factor) in enumerate(params):
        h = jnp.dot(h, w_t, precision=jax.lax.Precision.HIGHEST)
        mean = jnp.mean(h, axis=0, keepdims=True)
        var = jnp.mean((h - mean) ** 2, axis=0, keepdims=True)
        h = (h - mean) / jnp.sqrt(var + 1e-5)
        if i == n - 1:
            h = jax.nn.softmax((h + bias) * factor, axis=1)
        else:
            h = jax.nn.relu(h + bias)
    return h


if __name__ == "__main__":
    # Small, module-consistent shapes: input_shape=(4, 8, 8) -> input_dim=256.
    input_shape = (4, 8, 8)
    num_neurons = [128, 64, 10]
    batch = 8

    key = jax.random.PRNGKey(0)
    kx, kp = jax.random.split(key)

    x = jax.random.normal(kx, (batch,) + input_shape, dtype=jnp.float32)
    input_dim = 1
    for d in input_shape:
        input_dim *= d
    params = init_params(kp, input_dim, num_neurons)

    out = ladder_mlp_clear(x, params)
    out = jax.block_until_ready(out)

    ref = _reference(x, params)
    assert out.shape == (batch, num_neurons[-1])
    # Exact softmax divide: tolerance back to f32-matmul-level agreement.
    assert jnp.allclose(out, ref, atol=1e-4, rtol=1e-4), "mismatch vs reference"
    # Softmax rows sum to 1 up to per-element f32 rounding.
    assert jnp.allclose(jnp.sum(out, axis=1), 1.0, atol=1e-5), "rows not normalized"

    print("KERNEL_OK")
</pallas_src>

<mosaic_0001>
module attributes {stable_mosaic.version = 11 : i64} {
  func.func @_fused_kernel(%arg0: memref<8x256xf32, #tpu.memory_space<vmem>>, %arg1: memref<256x128xf32, #tpu.memory_space<vmem>>, %arg2: memref<128x64xf32, #tpu.memory_space<vmem>>, %arg3: memref<64x10xf32, #tpu.memory_space<vmem>>, %arg4: memref<4x128xf32, #tpu.memory_space<vmem>>, %arg5: memref<8x10xf32, #tpu.memory_space<vmem>>) attributes {dimension_semantics = [], scalar_prefetch = 0 : i64, scratch_operands = 0 : i64, tpu.core_type = #tpu.core_type<tc>} {
    %cst = arith.constant 1.250000e-01 : f32
    %0 = vector.broadcast %cst : f32 to vector<1x8xf32>
    %c0 = arith.constant 0 : index
    %c0_0 = arith.constant 0 : index
    %1 = vector.load %arg0[%c0, %c0_0] : memref<8x256xf32, #tpu.memory_space<vmem>>, vector<8x256xf32>
    %c0_1 = arith.constant 0 : index
    %c0_2 = arith.constant 0 : index
    %2 = vector.load %arg1[%c0_1, %c0_2] : memref<256x128xf32, #tpu.memory_space<vmem>>, vector<256x128xf32>
    %cst_3 = arith.constant dense<0.000000e+00> : vector<8x128xf32>
    %3 = tpu.matmul %1, %2, %cst_3 {dimension_numbers = #tpu.dot_dimension_numbers<[1], [0], [0], [1], [0, 0, 1, 1], [], []>} : vector<8x256xf32>, vector<256x128xf32>, vector<8x128xf32> -> vector<8x128xf32>
    %cst_4 = arith.constant dense<0.000000e+00> : vector<1x128xf32>
    %4 = tpu.matmul %0, %3, %cst_4 {dimension_numbers = #tpu.dot_dimension_numbers<[1], [0], [0], [1], [0, 0, 1, 1], [], []>} : vector<1x8xf32>, vector<8x128xf32>, vector<1x128xf32> -> vector<1x128xf32>
    %5 = vector.broadcast %4 : vector<1x128xf32> to vector<8x128xf32>
    %6 = arith.subf %3, %5 : vector<8x128xf32>
    %7 = arith.mulf %6, %6 : vector<8x128xf32>
    %cst_5 = arith.constant dense<0.000000e+00> : vector<1x128xf32>
    %8 = tpu.matmul %0, %7, %cst_5 {dimension_numbers = #tpu.dot_dimension_numbers<[1], [0], [0], [1], [0, 0, 1, 1], [], []>} : vector<1x8xf32>, vector<8x128xf32>, vector<1x128xf32> -> vector<1x128xf32>
    %cst_6 = arith.constant 9.99999974E-6 : f32
    %9 = vector.broadcast %cst_6 : f32 to vector<1x128xf32>
    %10 = arith.addf %8, %9 : vector<1x128xf32>
    %11 = math.rsqrt %10 : vector<1x128xf32>
    %12 = vector.broadcast %11 : vector<1x128xf32> to vector<8x128xf32>
    %13 = arith.mulf %6, %12 : vector<8x128xf32>
    %c0_7 = arith.constant 0 : index
    %c0_8 = arith.constant 0 : index
    %14 = vector.load %arg4[%c0_7, %c0_8] : memref<4x128xf32, #tpu.memory_space<vmem>>, vector<1x128xf32>
    %15 = vector.broadcast %14 : vector<1x128xf32> to vector<8x128xf32>
    %16 = arith.addf %13, %15 : vector<8x128xf32>
    %cst_9 = arith.constant 0.000000e+00 : f32
    %17 = vector.broadcast %cst_9 : f32 to vector<8x128xf32>
    %18 = arith.maximumf %16, %17 : vector<8x128xf32>
    %c0_10 = arith.constant 0 : index
    %c0_11 = arith.constant 0 : index
    %19 = vector.load %arg2[%c0_10, %c0_11] : memref<128x64xf32, #tpu.memory_space<vmem>>, vector<128x64xf32>
    %cst_12 = arith.constant dense<0.000000e+00> : vector<8x64xf32>
    %20 = tpu.matmul %18, %19, %cst_12 {dimension_numbers = #tpu.dot_dimension_numbers<[1], [0], [0], [1], [0, 0, 1, 1], [], []>} : vector<8x128xf32>, vector<128x64xf32>, vector<8x64xf32> -> vector<8x64xf32>
    %cst_13 = arith.constant dense<0.000000e+00> : vector<1x64xf32>
    %21 = tpu.matmul %0, %20, %cst_13 {dimension_numbers = #tpu.dot_dimension_numbers<[1], [0], [0], [1], [0, 0, 1, 1], [], []>} : vector<1x8xf32>, vector<8x64xf32>, vector<1x64xf32> -> vector<1x64xf32>
    %22 = vector.broadcast %21 : vector<1x64xf32> to vector<8x64xf32>
    %23 = arith.subf %20, %22 : vector<8x64xf32>
    %24 = arith.mulf %23, %23 : vector<8x64xf32>
    %cst_14 = arith.constant dense<0.000000e+00> : vector<1x64xf32>
    %25 = tpu.matmul %0, %24, %cst_14 {dimension_numbers = #tpu.dot_dimension_numbers<[1], [0], [0], [1], [0, 0, 1, 1], [], []>} : vector<1x8xf32>, vector<8x64xf32>, vector<1x64xf32> -> vector<1x64xf32>
    %cst_15 = arith.constant 9.99999974E-6 : f32
    %26 = vector.broadcast %cst_15 : f32 to vector<1x64xf32>
    %27 = arith.addf %25, %26 : vector<1x64xf32>
    %28 = math.rsqrt %27 : vector<1x64xf32>
    %29 = vector.broadcast %28 : vector<1x64xf32> to vector<8x64xf32>
    %30 = arith.mulf %23, %29 : vector<8x64xf32>
    %c1 = arith.constant 1 : index
    %c0_16 = arith.constant 0 : index
    %31 = vector.load %arg4[%c1, %c0_16] : memref<4x128xf32, #tpu.memory_space<vmem>>, vector<1x64xf32>
    %32 = vector.broadcast %31 : vector<1x64xf32> to vector<8x64xf32>
    %33 = arith.addf %30, %32 : vector<8x64xf32>
    %cst_17 = arith.constant 0.000000e+00 : f32
    %34 = vector.broadcast %cst_17 : f32 to vector<8x64xf32>
    %35 = arith.maximumf %33, %34 : vector<8x64xf32>
    %c0_18 = arith.constant 0 : index
    %c0_19 = arith.constant 0 : index
    %36 = vector.load %arg3[%c0_18, %c0_19] : memref<64x10xf32, #tpu.memory_space<vmem>>, vector<64x10xf32>
    %cst_20 = arith.constant dense<0.000000e+00> : vector<8x10xf32>
    %37 = tpu.matmul %35, %36, %cst_20 {dimension_numbers = #tpu.dot_dimension_numbers<[1], [0], [0], [1], [0, 0, 1, 1], [], []>} : vector<8x64xf32>, vector<64x10xf32>, vector<8x10xf32> -> vector<8x10xf32>
    %cst_21 = arith.constant dense<0.000000e+00> : vector<1x10xf32>
    %38 = tpu.matmul %0, %37, %cst_21 {dimension_numbers = #tpu.dot_dimension_numbers<[1], [0], [0], [1], [0, 0, 1, 1], [], []>} : vector<1x8xf32>, vector<8x10xf32>, vector<1x10xf32> -> vector<1x10xf32>
    %39 = vector.broadcast %38 : vector<1x10xf32> to vector<8x10xf32>
    %40 = arith.subf %37, %39 : vector<8x10xf32>
    %41 = arith.mulf %40, %40 : vector<8x10xf32>
    %cst_22 = arith.constant dense<0.000000e+00> : vector<1x10xf32>
    %42 = tpu.matmul %0, %41, %cst_22 {dimension_numbers = #tpu.dot_dimension_numbers<[1], [0], [0], [1], [0, 0, 1, 1], [], []>} : vector<1x8xf32>, vector<8x10xf32>, vector<1x10xf32> -> vector<1x10xf32>
    %cst_23 = arith.constant 9.99999974E-6 : f32
    %43 = vector.broadcast %cst_23 : f32 to vector<1x10xf32>
    %44 = arith.addf %42, %43 : vector<1x10xf32>
    %45 = math.rsqrt %44 : vector<1x10xf32>
    %46 = vector.broadcast %45 : vector<1x10xf32> to vector<8x10xf32>
    %47 = arith.mulf %40, %46 : vector<8x10xf32>
    %c2 = arith.constant 2 : index
    %c0_24 = arith.constant 0 : index
    %48 = vector.load %arg4[%c2, %c0_24] : memref<4x128xf32, #tpu.memory_space<vmem>>, vector<1x10xf32>
    %c3 = arith.constant 3 : index
    %c0_25 = arith.constant 0 : index
    %49 = vector.load %arg4[%c3, %c0_25] : memref<4x128xf32, #tpu.memory_space<vmem>>, vector<1x10xf32>
    %50 = vector.broadcast %48 : vector<1x10xf32> to vector<8x10xf32>
    %51 = arith.addf %47, %50 : vector<8x10xf32>
    %52 = vector.broadcast %49 : vector<1x10xf32> to vector<8x10xf32>
    %53 = arith.mulf %51, %52 : vector<8x10xf32>
    %cst_26 = arith.constant dense<0xFF800000> : vector<8xf32>
    %54 = vector.multi_reduction <maximumf>, %53, %cst_26 [1] : vector<8x10xf32> to vector<8xf32>
    %55 = vector.shape_cast %54 : vector<8xf32> to vector<8x1xf32>
    %56 = vector.broadcast %55 : vector<8x1xf32> to vector<8x10xf32>
    %57 = arith.subf %53, %56 : vector<8x10xf32>
    %58 = math.exp %57 : vector<8x10xf32>
    %cst_27 = arith.constant dense<0.000000e+00> : vector<8xf32>
    %59 = vector.multi_reduction <add>, %58, %cst_27 [1] : vector<8x10xf32> to vector<8xf32>
    %60 = vector.shape_cast %59 : vector<8xf32> to vector<8x1xf32>
    %61 = vector.broadcast %60 : vector<8x1xf32> to vector<8x10xf32>
    %62 = arith.divf %58, %61 : vector<8x10xf32>
    %c0_28 = arith.constant 0 : index
    %c0_29 = arith.constant 0 : index
    %63 = vector.load %arg5[%c0_28, %c0_29] : memref<8x10xf32, #tpu.memory_space<vmem>>, vector<8x10xf32>
    tpu.vector_store %arg5[%c0_28, %c0_29], %62 {strides = array<i32>} : memref<8x10xf32, #tpu.memory_space<vmem>>, vector<8x10xf32>,
    return
  }
}

</mosaic_0001>

<llo_original>
// kernel: tpu_custom_call.1
$region0: #{tpu_custom_call.1}
  #allocation0 [shape = 'u32[]', space=smem, size = 0x4, offset = 0x4, fixed_abs, tag = 'smem constant byte address 0x4 - core index']
  #allocation1 [shape = 'u32[144,128]{1,0:T(1,128)}', space=vmem, size = 0x12000, scoped, tag = 'internal scratch']
  %s0 = inlined_call_operand.vmem [shape: f32[8,256], index: 0, kind: input, shape index: {}]
  %s1 = inlined_call_operand.vmem [shape: f32[256,128], index: 1, kind: input, shape index: {}]
  %s2 = inlined_call_operand.vmem [shape: f32[128,64], index: 2, kind: input, shape index: {}]
  %s3 = inlined_call_operand.vmem [shape: f32[64,10], index: 3, kind: input, shape index: {}]
  %s4 = inlined_call_operand.vmem [shape: f32[4,128], index: 4, kind: input, shape index: {}]
  %s5 = inlined_call_operand.hbm [shape: f32[8,10], index: 5, kind: output, shape index: {}]
  %s6 = sld [smem:[#allocation0]]
  $region30: #{tpu_custom_call.1} parent=0
    _
  %s8 = ssub.s32 1, %s6
  %s9 = scalar_select 0, %s8, %s6
  $region1: #{tpu_custom_call.1} parent=0
    #allocation2 [shape = 'u8[4096]{0}', space=vmem, size = 0x1000, scoped, tag = 'output window, operand 0, single buffered']
    #allocation3 [shape = 's32[1]{0}', space=sflag, size = 0x4, scoped, tag = 'scoped memory for tpu_custom_call.1']
    %10 = vsyncpa [#allocation3], 0
    // Predicated region
    $region2: #{tpu_custom_call.1} parent=1 // pred_check
      _
    $region3: #{tpu_custom_call.1} parent=1 // pred_check_branch
      %12 = sbr.rel (0) target = $region5
    $region4: #{tpu_custom_call.1} parent=1 // pred_region
      _
    $region5: #{tpu_custom_call.1} parent=1 // pred_fallthru
      _
    // Predicated region
    $region6: #{tpu_custom_call.1} parent=1 // pred_check
      _
    $region7: #{tpu_custom_call.1} parent=1 // pred_check_branch
      %14 = sbr.rel (0) target = $region9
    $region8: #{tpu_custom_call.1} parent=1 // pred_region
      _
    $region9: #{tpu_custom_call.1} parent=1 // pred_fallthru
      _
    // Predicated region
    $region10: #{tpu_custom_call.1} parent=1 // pred_check
      _
    $region11: #{tpu_custom_call.1} parent=1 // pred_check_branch
      %16 = sbr.rel (0) target = $region13
    $region12: #{tpu_custom_call.1} parent=1 // pred_region
      _
    $region13: #{tpu_custom_call.1} parent=1 // pred_fallthru
      _
    // Predicated region
    $region14: #{tpu_custom_call.1} parent=1 // pred_check
      _
    $region15: #{tpu_custom_call.1} parent=1 // pred_check_branch
      %18 = sbr.rel (0) target = $region17
    $region16: #{tpu_custom_call.1} parent=1 // pred_region
      _
    $region17: #{tpu_custom_call.1} parent=1 // pred_fallthru
      _
    // Predicated region
    $region18: #{tpu_custom_call.1} parent=1 // pred_check
      _
    $region19: #{tpu_custom_call.1} parent=1 // pred_check_branch
      %20 = sbr.rel (0) target = $region21
    $region20: #{tpu_custom_call.1} parent=1 // pred_region
      _
    $region21: #{tpu_custom_call.1} parent=1 // pred_fallthru
      _
    %v21 = vld [vmem:[%s0] sm:$0xff]
    %v22 = vld [vmem:[%s0 + $0x8] sm:$0xff]
    %v23 = vld [vmem:[%s1] sm:$0xff]
    %v24 = vld [vmem:[%s1 + $0x8] sm:$0xff]
    %v25 = vld [vmem:[%s1 + $0x10] sm:$0xff]
    %v26 = vld [vmem:[%s1 + $0x18] sm:$0xff]
    %v27 = vld [vmem:[%s1 + $0x20] sm:$0xff]
    %v28 = vld [vmem:[%s1 + $0x28] sm:$0xff]
    %v29 = vld [vmem:[%s1 + $0x30] sm:$0xff]
    %v30 = vld [vmem:[%s1 + $0x38] sm:$0xff]
    %v31 = vld [vmem:[%s1 + $0x40] sm:$0xff]
    %v32 = vld [vmem:[%s1 + $0x48] sm:$0xff]
    %v33 = vld [vmem:[%s1 + $0x50] sm:$0xff]
    %v34 = vld [vmem:[%s1 + $0x58] sm:$0xff]
    %v35 = vld [vmem:[%s1 + $0x60] sm:$0xff]
    %v36 = vld [vmem:[%s1 + $0x68] sm:$0xff]
    %v37 = vld [vmem:[%s1 + $0x70] sm:$0xff]
    %v38 = vld [vmem:[%s1 + $0x78] sm:$0xff]
    %v39 = vld [vmem:[%s1 + $0x80] sm:$0xff]
    %v40 = vld [vmem:[%s1 + $0x88] sm:$0xff]
    %v41 = vld [vmem:[%s1 + $0x90] sm:$0xff]
    %v42 = vld [vmem:[%s1 + $0x98] sm:$0xff]
    %v43 = vld [vmem:[%s1 + $0xa0] sm:$0xff]
    %v44 = vld [vmem:[%s1 + $0xa8] sm:$0xff]
    %v45 = vld [vmem:[%s1 + $0xb0] sm:$0xff]
    %v46 = vld [vmem:[%s1 + $0xb8] sm:$0xff]
    %v47 = vld [vmem:[%s1 + $0xc0] sm:$0xff]
    %v48 = vld [vmem:[%s1 + $0xc8] sm:$0xff]
    %v49 = vld [vmem:[%s1 + $0xd0] sm:$0xff]
    %v50 = vld [vmem:[%s1 + $0xd8] sm:$0xff]
    %v51 = vld [vmem:[%s1 + $0xe0] sm:$0xff]
    %v52 = vld [vmem:[%s1 + $0xe8] sm:$0xff]
    %v53 = vld [vmem:[%s1 + $0xf0] sm:$0xff]
    %v54 = vld [vmem:[%s1 + $0xf8] sm:$0xff]
    %55 = vmatprep.subr.mxu0 0.0
    %56 = vmatpush1.msra.mxu0 %v23
    %57 = vmatprep.subr.mxu0 0.0
    %58 = vmatpush1.msra.mxu0 %v24
    %59 = vmatprep.subr.mxu0 0.0
    %60 = vmatpush1.msra.mxu0 %v25
    %61 = vmatprep.subr.mxu0 0.0
    %62 = vmatpush1.msra.mxu0 %v26
    %63 = vmatprep.subr.mxu0 0.0
    %64 = vmatpush1.msra.mxu0 %v27
    %65 = vmatprep.subr.mxu0 0.0
    %66 = vmatpush1.msra.mxu0 %v28
    %67 = vmatprep.subr.mxu0 0.0
    %68 = vmatpush1.msra.mxu0 %v29
    %69 = vmatprep.subr.mxu0 0.0
    %70 = vmatpush1.msra.mxu0 %v30
    %71 = vmatprep.subr.mxu0 0.0
    %72 = vmatpush1.msra.mxu0 %v31
    %73 = vmatprep.subr.mxu0 0.0
    %74 = vmatpush1.msra.mxu0 %v32
    %75 = vmatprep.subr.mxu0 0.0
    %76 = vmatpush1.msra.mxu0 %v33
    %77 = vmatprep.subr.mxu0 0.0
    %78 = vmatpush1.msra.mxu0 %v34
    %79 = vmatprep.subr.mxu0 0.0
    %80 = vmatpush1.msra.mxu0 %v35
    %81 = vmatprep.subr.mxu0 0.0
    %82 = vmatpush1.msra.mxu0 %v36
    %83 = vmatprep.subr.mxu0 0.0
    %84 = vmatpush1.msra.mxu0 %v37
    %85 = vmatprep.subr.mxu0 0.0
    %86 = vmatpush1.msra.mxu0 %v38
    %87 = vmatprep.subr.mxu0 0.0
    %88 = vmatpush1.msra.mxu0 %v39
    %89 = vmatprep.subr.mxu0 0.0
    %90 = vmatpush1.msra.mxu0 %v40
    %91 = vmatprep.subr.mxu0 0.0
    %92 = vmatpush1.msra.mxu0 %v41
    %93 = vmatprep.subr.mxu0 0.0
    %94 = vmatpush1.msra.mxu0 %v42
    %95 = vmatprep.subr.mxu0 0.0
    %96 = vmatpush1.msra.mxu0 %v43
    %97 = vmatprep.subr.mxu0 0.0
    %98 = vmatpush1.msra.mxu0 %v44
    %99 = vmatprep.subr.mxu0 0.0
    %100 = vmatpush1.msra.mxu0 %v45
    %101 = vmatprep.subr.mxu0 0.0
    %102 = vmatpush1.msra.mxu0 %v46
    %103 = vmatprep.subr.mxu0 0.0
    %104 = vmatpush1.msra.mxu0 %v47
    %105 = vmatprep.subr.mxu0 0.0
    %106 = vmatpush1.msra.mxu0 %v48
    %107 = vmatprep.subr.mxu0 0.0
    %108 = vmatpush1.msra.mxu0 %v49
    %109 = vmatprep.subr.mxu0 0.0
    %110 = vmatpush1.msra.mxu0 %v50
    %111 = vmatprep.subr.mxu0 0.0
    %112 = vmatpush1.msra.mxu0 %v51
    %113 = vmatprep.subr.mxu0 0.0
    %114 = vmatpush1.msra.mxu0 %v52
    %115 = vmatprep.subr.mxu0 0.0
    %116 = vmatpush1.msra.mxu0 %v53
    %117 = vmatprep.subr.mxu0 0.0
    %118 = vmatpush1.msra.mxu0 %v54
    %119 = vmatprep.mubr.f32.mxu0 %v22
    %120 = vmatmul.mubr.f32.gmra.mrb[0].mxu0 %v21
    %v121 = vpop.f32.mrb[0].mxu0
    %v122 = vadd.f32 0.0, %v121
    %v123 = vpop.f32.mrb[0].mxu0
    %124 = vdwg.mxu0
    %vm125 = vcmask 64512
    %v127 = vsel %vm125, 0.125, 0
    %129 = vmatprep.subr.mxu0 0.0
    %130 = vmatpush1.msra.mxu0 %v122
    %131 = vmatprep.subr.mxu0 0.0
    %132 = vmatpush1.msra.mxu0 0.0
    %133 = vmatprep.subr.mxu0 0.0
    %134 = vmatpush1.msra.mxu0 0.0
    %135 = vmatprep.subr.mxu0 0.0
    %136 = vmatpush1.msra.mxu0 0.0
    %137 = vmatprep.subr.mxu0 0.0
    %138 = vmatpush1.msra.mxu0 0.0
    %139 = vmatprep.subr.mxu0 0.0
    %140 = vmatpush1.msra.mxu0 0.0
    %141 = vmatprep.subr.mxu0 0.0
    %142 = vmatpush1.msra.mxu0 0.0
    %143 = vmatprep.subr.mxu0 0.0
    %144 = vmatpush1.msra.mxu0 0.0
    %145 = vmatprep.subr.mxu0 0.0
    %146 = vmatpush1.msra.mxu0 0.0
    %147 = vmatprep.subr.mxu0 0.0
    %148 = vmatpush1.msra.mxu0 0.0
    %149 = vmatprep.subr.mxu0 0.0
    %150 = vmatpush1.msra.mxu0 0.0
    %151 = vmatprep.subr.mxu0 0.0
    %152 = vmatpush1.msra.mxu0 0.0
    %153 = vmatprep.subr.mxu0 0.0
    %154 = vmatpush1.msra.mxu0 0.0
    %155 = vmatprep.subr.mxu0 0.0
    %156 = vmatpush1.msra.mxu0 0.0
    %157 = vmatprep.subr.mxu0 0.0
    %158 = vmatpush1.msra.mxu0 0.0
    %159 = vmatprep.subr.mxu0 0.0
    %160 = vmatpush1.msra.mxu0 0.0
    %161 = vmatprep.subr.mxu0 0.0
    %162 = vmatpush1.msra.mxu0 0.0
    %163 = vmatprep.subr.mxu0 0.0
    %164 = vmatpush1.msra.mxu0 0.0
    %165 = vmatprep.subr.mxu0 0.0
    %166 = vmatpush1.msra.mxu0 0.0
    %167 = vmatprep.subr.mxu0 0.0
    %168 = vmatpush1.msra.mxu0 0.0
    %169 = vmatprep.subr.mxu0 0.0
    %170 = vmatpush1.msra.mxu0 0.0
    %171 = vmatprep.subr.mxu0 0.0
    %172 = vmatpush1.msra.mxu0 0.0
    %173 = vmatprep.subr.mxu0 0.0
    %174 = vmatpush1.msra.mxu0 0.0
    %175 = vmatprep.subr.mxu0 0.0
    %176 = vmatpush1.msra.mxu0 0.0
    %177 = vmatprep.subr.mxu0 0.0
    %178 = vmatpush1.msra.mxu0 0.0
    %179 = vmatprep.subr.mxu0 0.0
    %180 = vmatpush1.msra.mxu0 0.0
    %181 = vmatprep.subr.mxu0 0.0
    %182 = vmatpush1.msra.mxu0 0.0
    %183 = vmatprep.subr.mxu0 0.0
    %184 = vmatpush1.msra.mxu0 0.0
    %185 = vmatprep.subr.mxu0 0.0
    %186 = vmatpush1.msra.mxu0 0.0
    %187 = vmatprep.subr.mxu0 0.0
    %188 = vmatpush1.msra.mxu0 0.0
    %189 = vmatprep.subr.mxu0 0.0
    %190 = vmatpush1.msra.mxu0 0.0
    %191 = vmatprep.subr.mxu0 0.0
    %192 = vmatpush1.msra.mxu0 0.0
    %193 = vmatprep.mubr.f32.mxu0 0.0
    %194 = vmatmul.mubr.f32.gmra.mrb[0].mxu0 %v127
    %v195 = vpop.f32.mrb[0].mxu0
    %v196 = vadd.f32 0.0, %v195
    %v197 = vpop.f32.mrb[0].mxu0
    %198 = vdwg.mxu0
    %v199 = vlaneseq
    %v200 = vshrl.u32 %v199, 7
    %v201 = vsub.s32 0, %v200
    %v202 = vrot.slane %v196, %v201
    %v203 = vsub.f32 %v122, %v202
    %v204 = vmul.f32 %v203, %v203
    %205 = vmatprep.subr.mxu0 0.0
    %206 = vmatpush1.msra.mxu0 %v204
    %207 = vmatprep.subr.mxu0 0.0
    %208 = vmatpush1.msra.mxu0 0.0
    %209 = vmatprep.subr.mxu0 0.0
    %210 = vmatpush1.msra.mxu0 0.0
    %211 = vmatprep.subr.mxu0 0.0
    %212 = vmatpush1.msra.mxu0 0.0
    %213 = vmatprep.subr.mxu0 0.0
    %214 = vmatpush1.msra.mxu0 0.0
    %215 = vmatprep.subr.mxu0 0.0
    %216 = vmatpush1.msra.mxu0 0.0
    %217 = vmatprep.subr.mxu0 0.0
    %218 = vmatpush1.msra.mxu0 0.0
    %219 = vmatprep.subr.mxu0 0.0
    %220 = vmatpush1.msra.mxu0 0.0
    %221 = vmatprep.subr.mxu0 0.0
    %222 = vmatpush1.msra.mxu0 0.0
    %223 = vmatprep.subr.mxu0 0.0
    %224 = vmatpush1.msra.mxu0 0.0
    %225 = vmatprep.subr.mxu0 0.0
    %226 = vmatpush1.msra.mxu0 0.0
    %227 = vmatprep.subr.mxu0 0.0
    %228 = vmatpush1.msra.mxu0 0.0
    %229 = vmatprep.subr.mxu0 0.0
    %230 = vmatpush1.msra.mxu0 0.0
    %231 = vmatprep.subr.mxu0 0.0
    %232 = vmatpush1.msra.mxu0 0.0
    %233 = vmatprep.subr.mxu0 0.0
    %234 = vmatpush1.msra.mxu0 0.0
    %235 = vmatprep.subr.mxu0 0.0
    %236 = vmatpush1.msra.mxu0 0.0
    %237 = vmatprep.subr.mxu0 0.0
    %238 = vmatpush1.msra.mxu0 0.0
    %239 = vmatprep.subr.mxu0 0.0
    %240 = vmatpush1.msra.mxu0 0.0
    %241 = vmatprep.subr.mxu0 0.0
    %242 = vmatpush1.msra.mxu0 0.0
    %243 = vmatprep.subr.mxu0 0.0
    %244 = vmatpush1.msra.mxu0 0.0
    %245 = vmatprep.subr.mxu0 0.0
    %246 = vmatpush1.msra.mxu0 0.0
    %247 = vmatprep.subr.mxu0 0.0
    %248 = vmatpush1.msra.mxu0 0.0
    %249 = vmatprep.subr.mxu0 0.0
    %250 = vmatpush1.msra.mxu0 0.0
    %251 = vmatprep.subr.mxu0 0.0
    %252 = vmatpush1.msra.mxu0 0.0
    %253 = vmatprep.subr.mxu0 0.0
    %254 = vmatpush1.msra.mxu0 0.0
    %255 = vmatprep.subr.mxu0 0.0
    %256 = vmatpush1.msra.mxu0 0.0
    %257 = vmatprep.subr.mxu0 0.0
    %258 = vmatpush1.msra.mxu0 0.0
    %259 = vmatprep.subr.mxu0 0.0
    %260 = vmatpush1.msra.mxu0 0.0
    %261 = vmatprep.subr.mxu0 0.0
    %262 = vmatpush1.msra.mxu0 0.0
    %263 = vmatprep.subr.mxu0 0.0
    %264 = vmatpush1.msra.mxu0 0.0
    %265 = vmatprep.subr.mxu0 0.0
    %266 = vmatpush1.msra.mxu0 0.0
    %267 = vmatprep.subr.mxu0 0.0
    %268 = vmatpush1.msra.mxu0 0.0
    %269 = vmatprep.mubr.f32.mxu0 0.0
    %270 = vmatmul.mubr.f32.gmra.mrb[0].mxu0 %v127
    %v271 = vpop.f32.mrb[0].mxu0
    %v272 = vadd.f32 1e-05, %v271
    %v273 = vpop.f32.mrb[0].mxu0
    %274 = vdwg.mxu0
    %v275 = vrsqrt.pop %v272
    %v276 = vlaneseq
    %v277 = vshrl.u32 %v276, 7
    %v278 = vsub.s32 0, %v277
    %v279 = vrot.slane %v275, %v278
    %v280 = vmul.f32 %v203, %v279
    %v281 = vld [vmem:[%s4] sm:$0x1]
    %v282 = vlaneseq
    %v283 = vshrl.u32 %v282, 7
    %v284 = vsub.s32 0, %v283
    %v285 = vrot.slane %v281, %v284
    %v286 = vadd.f32 %v280, %v285
    %v287 = vmax.f32 %v286, 0.0
    %v288 = vld [vmem:[%s2] sm:$0xff]
    %v289 = vld [vmem:[%s2 + $0x8] sm:$0xff]
    %v290 = vld [vmem:[%s2 + $0x10] sm:$0xff]
    %v291 = vld [vmem:[%s2 + $0x18] sm:$0xff]
    %v292 = vld [vmem:[%s2 + $0x20] sm:$0xff]
    %v293 = vld [vmem:[%s2 + $0x28] sm:$0xff]
    %v294 = vld [vmem:[%s2 + $0x30] sm:$0xff]
    %v295 = vld [vmem:[%s2 + $0x38] sm:$0xff]
    %v296 = vld [vmem:[%s2 + $0x40] sm:$0xff]
    %v297 = vld [vmem:[%s2 + $0x48] sm:$0xff]
    %v298 = vld [vmem:[%s2 + $0x50] sm:$0xff]
    %v299 = vld [vmem:[%s2 + $0x58] sm:$0xff]
    %v300 = vld [vmem:[%s2 + $0x60] sm:$0xff]
    %v301 = vld [vmem:[%s2 + $0x68] sm:$0xff]
    %v302 = vld [vmem:[%s2 + $0x70] sm:$0xff]
    %v303 = vld [vmem:[%s2 + $0x78] sm:$0xff]
    %304 = vmatprep.subr.mxu0 0.0
    %305 = vmatpush1.msra.mxu0 %v288
    %306 = vmatprep.subr.mxu0 0.0
    %307 = vmatpush1.msra.mxu0 %v289
    %308 = vmatprep.subr.mxu0 0.0
    %309 = vmatpush1.msra.mxu0 %v290
    %310 = vmatprep.subr.mxu0 0.0
    %311 = vmatpush1.msra.mxu0 %v291
    %312 = vmatprep.subr.mxu0 0.0
    %313 = vmatpush1.msra.mxu0 %v292
    %314 = vmatprep.subr.mxu0 0.0
    %315 = vmatpush1.msra.mxu0 %v293
    %316 = vmatprep.subr.mxu0 0.0
    %317 = vmatpush1.msra.mxu0 %v294
    %318 = vmatprep.subr.mxu0 0.0
    %319 = vmatpush1.msra.mxu0 %v295
    %320 = vmatprep.subr.mxu0 0.0
    %321 = vmatpush1.msra.mxu0 %v296
    %322 = vmatprep.subr.mxu0 0.0
    %323 = vmatpush1.msra.mxu0 %v297
    %324 = vmatprep.subr.mxu0 0.0
    %325 = vmatpush1.msra.mxu0 %v298
    %326 = vmatprep.subr.mxu0 0.0
    %327 = vmatpush1.msra.mxu0 %v299
    %328 = vmatprep.subr.mxu0 0.0
    %329 = vmatpush1.msra.mxu0 %v300
    %330 = vmatprep.subr.mxu0 0.0
    %331 = vmatpush1.msra.mxu0 %v301
    %332 = vmatprep.subr.mxu0 0.0
    %333 = vmatpush1.msra.mxu0 %v302
    %334 = vmatprep.subr.mxu0 0.0
    %335 = vmatpush1.msra.mxu0 %v303
    %336 = vmatprep.subr.mxu0 0.0
    %337 = vmatpush1.msra.mxu0 0.0
    %338 = vmatprep.subr.mxu0 0.0
    %339 = vmatpush1.msra.mxu0 0.0
    %340 = vmatprep.subr.mxu0 0.0
    %341 = vmatpush1.msra.mxu0 0.0
    %342 = vmatprep.subr.mxu0 0.0
    %343 = vmatpush1.msra.mxu0 0.0
    %344 = vmatprep.subr.mxu0 0.0
    %345 = vmatpush1.msra.mxu0 0.0
    %346 = vmatprep.subr.mxu0 0.0
    %347 = vmatpush1.msra.mxu0 0.0
    %348 = vmatprep.subr.mxu0 0.0
    %349 = vmatpush1.msra.mxu0 0.0
    %350 = vmatprep.subr.mxu0 0.0
    %351 = vmatpush1.msra.mxu0 0.0
    %352 = vmatprep.subr.mxu0 0.0
    %353 = vmatpush1.msra.mxu0 0.0
    %354 = vmatprep.subr.mxu0 0.0
    %355 = vmatpush1.msra.mxu0 0.0
    %356 = vmatprep.subr.mxu0 0.0
    %357 = vmatpush1.msra.mxu0 0.0
    %358 = vmatprep.subr.mxu0 0.0
    %359 = vmatpush1.msra.mxu0 0.0
    %360 = vmatprep.subr.mxu0 0.0
    %361 = vmatpush1.msra.mxu0 0.0
    %362 = vmatprep.subr.mxu0 0.0
    %363 = vmatpush1.msra.mxu0 0.0
    %364 = vmatprep.subr.mxu0 0.0
    %365 = vmatpush1.msra.mxu0 0.0
    %366 = vmatprep.subr.mxu0 0.0
    %367 = vmatpush1.msra.mxu0 0.0
    %368 = vmatprep.mubr.f32.mxu0 0.0
    %369 = vmatmul.mubr.f32.gmra.mrb[0].mxu0 %v287
    %v370 = vpop.f32.mrb[0].mxu0
    %v371 = vadd.f32 0.0, %v370
    %v372 = vpop.f32.mrb[0].mxu0
    %373 = vdwg.mxu0
    %374 = vmatprep.subr.mxu0 0.0
    %375 = vmatpush1.msra.mxu0 %v371
    %376 = vmatprep.subr.mxu0 0.0
    %377 = vmatpush1.msra.mxu0 0.0
    %378 = vmatprep.subr.mxu0 0.0
    %379 = vmatpush1.msra.mxu0 0.0
    %380 = vmatprep.subr.mxu0 0.0
    %381 = vmatpush1.msra.mxu0 0.0
    %382 = vmatprep.subr.mxu0 0.0
    %383 = vmatpush1.msra.mxu0 0.0
    %384 = vmatprep.subr.mxu0 0.0
    %385 = vmatpush1.msra.mxu0 0.0
    %386 = vmatprep.subr.mxu0 0.0
    %387 = vmatpush1.msra.mxu0 0.0
    %388 = vmatprep.subr.mxu0 0.0
    %389 = vmatpush1.msra.mxu0 0.0
    %390 = vmatprep.subr.mxu0 0.0
    %391 = vmatpush1.msra.mxu0 0.0
    %392 = vmatprep.subr.mxu0 0.0
    %393 = vmatpush1.msra.mxu0 0.0
    %394 = vmatprep.subr.mxu0 0.0
    %395 = vmatpush1.msra.mxu0 0.0
    %396 = vmatprep.subr.mxu0 0.0
    %397 = vmatpush1.msra.mxu0 0.0
    %398 = vmatprep.subr.mxu0 0.0
    %399 = vmatpush1.msra.mxu0 0.0
    %400 = vmatprep.subr.mxu0 0.0
    %401 = vmatpush1.msra.mxu0 0.0
    %402 = vmatprep.subr.mxu0 0.0
    %403 = vmatpush1.msra.mxu0 0.0
    %404 = vmatprep.subr.mxu0 0.0
    %405 = vmatpush1.msra.mxu0 0.0
    %406 = vmatprep.subr.mxu0 0.0
    %407 = vmatpush1.msra.mxu0 0.0
    %408 = vmatprep.subr.mxu0 0.0
    %409 = vmatpush1.msra.mxu0 0.0
    %410 = vmatprep.subr.mxu0 0.0
    %411 = vmatpush1.msra.mxu0 0.0
    %412 = vmatprep.subr.mxu0 0.0
    %413 = vmatpush1.msra.mxu0 0.0
    %414 = vmatprep.subr.mxu0 0.0
    %415 = vmatpush1.msra.mxu0 0.0
    %416 = vmatprep.subr.mxu0 0.0
    %417 = vmatpush1.msra.mxu0 0.0
    %418 = vmatprep.subr.mxu0 0.0
    %419 = vmatpush1.msra.mxu0 0.0
    %420 = vmatprep.subr.mxu0 0.0
    %421 = vmatpush1.msra.mxu0 0.0
    %422 = vmatprep.subr.mxu0 0.0
    %423 = vmatpush1.msra.mxu0 0.0
    %424 = vmatprep.subr.mxu0 0.0
    %425 = vmatpush1.msra.mxu0 0.0
    %426 = vmatprep.subr.mxu0 0.0
    %427 = vmatpush1.msra.mxu0 0.0
    %428 = vmatprep.subr.mxu0 0.0
    %429 = vmatpush1.msra.mxu0 0.0
    %430 = vmatprep.subr.mxu0 0.0
    %431 = vmatpush1.msra.mxu0 0.0
    %432 = vmatprep.subr.mxu0 0.0
    %433 = vmatpush1.msra.mxu0 0.0
    %434 = vmatprep.subr.mxu0 0.0
    %435 = vmatpush1.msra.mxu0 0.0
    %436 = vmatprep.subr.mxu0 0.0
    %437 = vmatpush1.msra.mxu0 0.0
    %438 = vmatprep.mubr.f32.mxu0 0.0
    %439 = vmatmul.mubr.f32.gmra.mrb[0].mxu0 %v127
    %v440 = vpop.f32.mrb[0].mxu0
    %v441 = vadd.f32 0.0, %v440
    %v442 = vpop.f32.mrb[0].mxu0
    %443 = vdwg.mxu0
    %v444 = vlaneseq
    %v445 = vshrl.u32 %v444, 7
    %v446 = vsub.s32 0, %v445
    %v447 = vrot.slane %v441, %v446
    %v448 = vsub.f32 %v371, %v447
    %v449 = vmul.f32 %v448, %v448
    %450 = vmatprep.subr.mxu0 0.0
    %451 = vmatpush1.msra.mxu0 %v449
    %452 = vmatprep.subr.mxu0 0.0
    %453 = vmatpush1.msra.mxu0 0.0
    %454 = vmatprep.subr.mxu0 0.0
    %455 = vmatpush1.msra.mxu0 0.0
    %456 = vmatprep.subr.mxu0 0.0
    %457 = vmatpush1.msra.mxu0 0.0
    %458 = vmatprep.subr.mxu0 0.0
    %459 = vmatpush1.msra.mxu0 0.0
    %460 = vmatprep.subr.mxu0 0.0
    %461 = vmatpush1.msra.mxu0 0.0
    %462 = vmatprep.subr.mxu0 0.0
    %463 = vmatpush1.msra.mxu0 0.0
    %464 = vmatprep.subr.mxu0 0.0
    %465 = vmatpush1.msra.mxu0 0.0
    %466 = vmatprep.subr.mxu0 0.0
    %467 = vmatpush1.msra.mxu0 0.0
    %468 = vmatprep.subr.mxu0 0.0
    %469 = vmatpush1.msra.mxu0 0.0
    %470 = vmatprep.subr.mxu0 0.0
    %471 = vmatpush1.msra.mxu0 0.0
    %472 = vmatprep.subr.mxu0 0.0
    %473 = vmatpush1.msra.mxu0 0.0
    %474 = vmatprep.subr.mxu0 0.0
    %475 = vmatpush1.msra.mxu0 0.0
    %476 = vmatprep.subr.mxu0 0.0
    %477 = vmatpush1.msra.mxu0 0.0
    %478 = vmatprep.subr.mxu0 0.0
    %479 = vmatpush1.msra.mxu0 0.0
    %480 = vmatprep.subr.mxu0 0.0
    %481 = vmatpush1.msra.mxu0 0.0
    %482 = vmatprep.subr.mxu0 0.0
    %483 = vmatpush1.msra.mxu0 0.0
    %484 = vmatprep.subr.mxu0 0.0
    %485 = vmatpush1.msra.mxu0 0.0
    %486 = vmatprep.subr.mxu0 0.0
    %487 = vmatpush1.msra.mxu0 0.0
    %488 = vmatprep.subr.mxu0 0.0
    %489 = vmatpush1.msra.mxu0 0.0
    %490 = vmatprep.subr.mxu0 0.0
    %491 = vmatpush1.msra.mxu0 0.0
    %492 = vmatprep.subr.mxu0 0.0
    %493 = vmatpush1.msra.mxu0 0.0
    %494 = vmatprep.subr.mxu0 0.0
    %495 = vmatpush1.msra.mxu0 0.0
    %496 = vmatprep.subr.mxu0 0.0
    %497 = vmatpush1.msra.mxu0 0.0
    %498 = vmatprep.subr.mxu0 0.0
    %499 = vmatpush1.msra.mxu0 0.0
    %500 = vmatprep.subr.mxu0 0.0
    %501 = vmatpush1.msra.mxu0 0.0
    %502 = vmatprep.subr.mxu0 0.0
    %503 = vmatpush1.msra.mxu0 0.0
    %504 = vmatprep.subr.mxu0 0.0
    %505 = vmatpush1.msra.mxu0 0.0
    %506 = vmatprep.subr.mxu0 0.0
    %507 = vmatpush1.msra.mxu0 0.0
    %508 = vmatprep.subr.mxu0 0.0
    %509 = vmatpush1.msra.mxu0 0.0
    %510 = vmatprep.subr.mxu0 0.0
    %511 = vmatpush1.msra.mxu0 0.0
    %512 = vmatprep.subr.mxu0 0.0
    %513 = vmatpush1.msra.mxu0 0.0
    %514 = vmatprep.mubr.f32.mxu0 0.0
    %515 = vmatmul.mubr.f32.gmra.mrb[0].mxu0 %v127
    %v516 = vpop.f32.mrb[0].mxu0
    %v517 = vadd.f32 1e-05, %v516
    %v518 = vpop.f32.mrb[0].mxu0
    %519 = vdwg.mxu0
    %v520 = vrsqrt.pop %v517
    %v521 = vlaneseq
    %v522 = vshrl.u32 %v521, 7
    %v523 = vsub.s32 0, %v522
    %v524 = vrot.slane %v520, %v523
    %v525 = vmul.f32 %v448, %v524
    %v526 = vld [vmem:[%s4 + $0x1] sm:$0x1]
    %v527 = vlaneseq
    %v528 = vshrl.u32 %v527, 7
    %v529 = vsub.s32 0, %v528
    %v530 = vrot.slane %v526, %v529
    %v531 = vadd.f32 %v525, %v530
    %v532 = vmax.f32 %v531, 0.0
    %v533 = vld [vmem:[%s3] sm:$0xff]
    %v534 = vld [vmem:[%s3 + $0x8] sm:$0xff]
    %v535 = vld [vmem:[%s3 + $0x10] sm:$0xff]
    %v536 = vld [vmem:[%s3 + $0x18] sm:$0xff]
    %v537 = vld [vmem:[%s3 + $0x20] sm:$0xff]
    %v538 = vld [vmem:[%s3 + $0x28] sm:$0xff]
    %v539 = vld [vmem:[%s3 + $0x30] sm:$0xff]
    %v540 = vld [vmem:[%s3 + $0x38] sm:$0xff]
    %vm541 = vcmask 523264
    %v543 = vsel %vm541, %v532, 0
    %545 = vmatprep.subr.mxu0 0.0
    %546 = vmatpush1.msra.mxu0 %v533
    %547 = vmatprep.subr.mxu0 0.0
    %548 = vmatpush1.msra.mxu0 %v534
    %549 = vmatprep.subr.mxu0 0.0
    %550 = vmatpush1.msra.mxu0 %v535
    %551 = vmatprep.subr.mxu0 0.0
    %552 = vmatpush1.msra.mxu0 %v536
    %553 = vmatprep.subr.mxu0 0.0
    %554 = vmatpush1.msra.mxu0 %v537
    %555 = vmatprep.subr.mxu0 0.0
    %556 = vmatpush1.msra.mxu0 %v538
    %557 = vmatprep.subr.mxu0 0.0
    %558 = vmatpush1.msra.mxu0 %v539
    %559 = vmatprep.subr.mxu0 0.0
    %560 = vmatpush1.msra.mxu0 %v540
    %561 = vmatprep.subr.mxu0 0.0
    %562 = vmatpush1.msra.mxu0 0.0
    %563 = vmatprep.subr.mxu0 0.0
    %564 = vmatpush1.msra.mxu0 0.0
    %565 = vmatprep.subr.mxu0 0.0
    %566 = vmatpush1.msra.mxu0 0.0
    %567 = vmatprep.subr.mxu0 0.0
    %568 = vmatpush1.msra.mxu0 0.0
    %569 = vmatprep.subr.mxu0 0.0
    %570 = vmatpush1.msra.mxu0 0.0
    %571 = vmatprep.subr.mxu0 0.0
    %572 = vmatpush1.msra.mxu0 0.0
    %573 = vmatprep.subr.mxu0 0.0
    %574 = vmatpush1.msra.mxu0 0.0
    %575 = vmatprep.subr.mxu0 0.0
    %576 = vmatpush1.msra.mxu0 0.0
    %577 = vmatprep.subr.mxu0 0.0
    %578 = vmatpush1.msra.mxu0 0.0
    %579 = vmatprep.subr.mxu0 0.0
    %580 = vmatpush1.msra.mxu0 0.0
    %581 = vmatprep.subr.mxu0 0.0
    %582 = vmatpush1.msra.mxu0 0.0
    %583 = vmatprep.subr.mxu0 0.0
    %584 = vmatpush1.msra.mxu0 0.0
    %585 = vmatprep.subr.mxu0 0.0
    %586 = vmatpush1.msra.mxu0 0.0
    %587 = vmatprep.subr.mxu0 0.0
    %588 = vmatpush1.msra.mxu0 0.0
    %589 = vmatprep.subr.mxu0 0.0
    %590 = vmatpush1.msra.mxu0 0.0
    %591 = vmatprep.subr.mxu0 0.0
    %592 = vmatpush1.msra.mxu0 0.0
    %593 = vmatprep.subr.mxu0 0.0
    %594 = vmatpush1.msra.mxu0 0.0
    %595 = vmatprep.subr.mxu0 0.0
    %596 = vmatpush1.msra.mxu0 0.0
    %597 = vmatprep.subr.mxu0 0.0
    %598 = vmatpush1.msra.mxu0 0.0
    %599 = vmatprep.subr.mxu0 0.0
    %600 = vmatpush1.msra.mxu0 0.0
    %601 = vmatprep.subr.mxu0 0.0
    %602 = vmatpush1.msra.mxu0 0.0
    %603 = vmatprep.subr.mxu0 0.0
    %604 = vmatpush1.msra.mxu0 0.0
    %605 = vmatprep.subr.mxu0 0.0
    %606 = vmatpush1.msra.mxu0 0.0
    %607 = vmatprep.subr.mxu0 0.0
    %608 = vmatpush1.msra.mxu0 0.0
    %609 = vmatprep.mubr.f32.mxu0 0.0
    %610 = vmatmul.mubr.f32.gmra.mrb[0].mxu0 %v543
    %v611 = vpop.f32.mrb[0].mxu0
    %v612 = vadd.f32 0.0, %v611
    %v613 = vpop.f32.mrb[0].mxu0
    %614 = vdwg.mxu0
    %615 = vmatprep.subr.mxu0 0.0
    %616 = vmatpush1.msra.mxu0 %v612
    %617 = vmatprep.subr.mxu0 0.0
    %618 = vmatpush1.msra.mxu0 0.0
    %619 = vmatprep.subr.mxu0 0.0
    %620 = vmatpush1.msra.mxu0 0.0
    %621 = vmatprep.subr.mxu0 0.0
    %622 = vmatpush1.msra.mxu0 0.0
    %623 = vmatprep.subr.mxu0 0.0
    %624 = vmatpush1.msra.mxu0 0.0
    %625 = vmatprep.subr.mxu0 0.0
    %626 = vmatpush1.msra.mxu0 0.0
    %627 = vmatprep.subr.mxu0 0.0
    %628 = vmatpush1.msra.mxu0 0.0
    %629 = vmatprep.subr.mxu0 0.0
    %630 = vmatpush1.msra.mxu0 0.0
    %631 = vmatprep.subr.mxu0 0.0
    %632 = vmatpush1.msra.mxu0 0.0
    %633 = vmatprep.subr.mxu0 0.0
    %634 = vmatpush1.msra.mxu0 0.0
    %635 = vmatprep.subr.mxu0 0.0
    %636 = vmatpush1.msra.mxu0 0.0
    %637 = vmatprep.subr.mxu0 0.0
    %638 = vmatpush1.msra.mxu0 0.0
    %639 = vmatprep.subr.mxu0 0.0
    %640 = vmatpush1.msra.mxu0 0.0
    %641 = vmatprep.subr.mxu0 0.0
    %642 = vmatpush1.msra.mxu0 0.0
    %643 = vmatprep.subr.mxu0 0.0
    %644 = vmatpush1.msra.mxu0 0.0
    %645 = vmatprep.subr.mxu0 0.0
    %646 = vmatpush1.msra.mxu0 0.0
    %647 = vmatprep.subr.mxu0 0.0
    %648 = vmatpush1.msra.mxu0 0.0
    %649 = vmatprep.subr.mxu0 0.0
    %650 = vmatpush1.msra.mxu0 0.0
    %651 = vmatprep.subr.mxu0 0.0
    %652 = vmatpush1.msra.mxu0 0.0
    %653 = vmatprep.subr.mxu0 0.0
    %654 = vmatpush1.msra.mxu0 0.0
    %655 = vmatprep.subr.mxu0 0.0
    %656 = vmatpush1.msra.mxu0 0.0
    %657 = vmatprep.subr.mxu0 0.0
    %658 = vmatpush1.msra.mxu0 0.0
    %659 = vmatprep.subr.mxu0 0.0
    %660 = vmatpush1.msra.mxu0 0.0
    %661 = vmatprep.subr.mxu0 0.0
    %662 = vmatpush1.msra.mxu0 0.0
    %663 = vmatprep.subr.mxu0 0.0
    %664 = vmatpush1.msra.mxu0 0.0
    %665 = vmatprep.subr.mxu0 0.0
    %666 = vmatpush1.msra.mxu0 0.0
    %667 = vmatprep.subr.mxu0 0.0
    %668 = vmatpush1.msra.mxu0 0.0
    %669 = vmatprep.subr.mxu0 0.0
    %670 = vmatpush1.msra.mxu0 0.0
    %671 = vmatprep.subr.mxu0 0.0
    %672 = vmatpush1.msra.mxu0 0.0
    %673 = vmatprep.subr.mxu0 0.0
    %674 = vmatpush1.msra.mxu0 0.0
    %675 = vmatprep.subr.mxu0 0.0
    %676 = vmatpush1.msra.mxu0 0.0
    %677 = vmatprep.subr.mxu0 0.0
    %678 = vmatpush1.msra.mxu0 0.0
    %679 = vmatprep.mubr.f32.mxu0 0.0
    %680 = vmatmul.mubr.f32.gmra.mrb[0].mxu0 %v127
    %v681 = vpop.f32.mrb[0].mxu0
    %v682 = vadd.f32 0.0, %v681
    %v683 = vpop.f32.mrb[0].mxu0
    %684 = vdwg.mxu0
    %v685 = vlaneseq
    %v686 = vshrl.u32 %v685, 7
    %v687 = vsub.s32 0, %v686
    %v688 = vrot.slane %v682, %v687
    %v689 = vsub.f32 %v612, %v688
    %v690 = vmul.f32 %v689, %v689
    %691 = vmatprep.subr.mxu0 0.0
    %692 = vmatpush1.msra.mxu0 %v690
    %693 = vmatprep.subr.mxu0 0.0
    %694 = vmatpush1.msra.mxu0 0.0
    %695 = vmatprep.subr.mxu0 0.0
    %696 = vmatpush1.msra.mxu0 0.0
    %697 = vmatprep.subr.mxu0 0.0
    %698 = vmatpush1.msra.mxu0 0.0
    %699 = vmatprep.subr.mxu0 0.0
    %700 = vmatpush1.msra.mxu0 0.0
    %701 = vmatprep.subr.mxu0 0.0
    %702 = vmatpush1.msra.mxu0 0.0
    %703 = vmatprep.subr.mxu0 0.0
    %704 = vmatpush1.msra.mxu0 0.0
    %705 = vmatprep.subr.mxu0 0.0
    %706 = vmatpush1.msra.mxu0 0.0
    %707 = vmatprep.subr.mxu0 0.0
    %708 = vmatpush1.msra.mxu0 0.0
    %709 = vmatprep.subr.mxu0 0.0
    %710 = vmatpush1.msra.mxu0 0.0
    %711 = vmatprep.subr.mxu0 0.0
    %712 = vmatpush1.msra.mxu0 0.0
    %713 = vmatprep.subr.mxu0 0.0
    %714 = vmatpush1.msra.mxu0 0.0
    %715 = vmatprep.subr.mxu0 0.0
    %716 = vmatpush1.msra.mxu0 0.0
    %717 = vmatprep.subr.mxu0 0.0
    %718 = vmatpush1.msra.mxu0 0.0
    %719 = vmatprep.subr.mxu0 0.0
    %720 = vmatpush1.msra.mxu0 0.0
    %721 = vmatprep.subr.mxu0 0.0
    %722 = vmatpush1.msra.mxu0 0.0
    %723 = vmatprep.subr.mxu0 0.0
    %724 = vmatpush1.msra.mxu0 0.0
    %725 = vmatprep.subr.mxu0 0.0
    %726 = vmatpush1.msra.mxu0 0.0
    %727 = vmatprep.subr.mxu0 0.0
    %728 = vmatpush1.msra.mxu0 0.0
    %729 = vmatprep.subr.mxu0 0.0
    %730 = vmatpush1.msra.mxu0 0.0
    %731 = vmatprep.subr.mxu0 0.0
    %732 = vmatpush1.msra.mxu0 0.0
    %733 = vmatprep.subr.mxu0 0.0
    %734 = vmatpush1.msra.mxu0 0.0
    %735 = vmatprep.subr.mxu0 0.0
    %736 = vmatpush1.msra.mxu0 0.0
    %737 = vmatprep.subr.mxu0 0.0
    %738 = vmatpush1.msra.mxu0 0.0
    %739 = vmatprep.subr.mxu0 0.0
    %740 = vmatpush1.msra.mxu0 0.0
    %741 = vmatprep.subr.mxu0 0.0
    %742 = vmatpush1.msra.mxu0 0.0
    %743 = vmatprep.subr.mxu0 0.0
    %744 = vmatpush1.msra.mxu0 0.0
    %745 = vmatprep.subr.mxu0 0.0
    %746 = vmatpush1.msra.mxu0 0.0
    %747 = vmatprep.subr.mxu0 0.0
    %748 = vmatpush1.msra.mxu0 0.0
    %749 = vmatprep.subr.mxu0 0.0
    %750 = vmatpush1.msra.mxu0 0.0
    %751 = vmatprep.subr.mxu0 0.0
    %752 = vmatpush1.msra.mxu0 0.0
    %753 = vmatprep.subr.mxu0 0.0
    %754 = vmatpush1.msra.mxu0 0.0
    %755 = vmatprep.mubr.f32.mxu0 0.0
    %756 = vmatmul.mubr.f32.gmra.mrb[0].mxu0 %v127
    %v757 = vpop.f32.mrb[0].mxu0
    %v758 = vadd.f32 1e-05, %v757
    %v759 = vpop.f32.mrb[0].mxu0
    %760 = vdwg.mxu0
    %v761 = vrsqrt.pop %v758
    %v762 = vlaneseq
    %v763 = vshrl.u32 %v762, 7
    %v764 = vsub.s32 0, %v763
    %v765 = vrot.slane %v761, %v764
    %v766 = vmul.f32 %v689, %v765
    %v767 = vld [vmem:[%s4 + $0x2] sm:$0x1]
    %v768 = vld [vmem:[%s4 + $0x3] sm:$0x1]
    %v769 = vlaneseq
    %v770 = vshrl.u32 %v769, 7
    %v771 = vsub.s32 0, %v770
    %v772 = vrot.slane %v767, %v771
    %v773 = vadd.f32 %v766, %v772
    %v774 = vlaneseq
    %v775 = vshrl.u32 %v774, 7
    %v776 = vsub.s32 0, %v775
    %v777 = vrot.slane %v768, %v776
    %v778 = vmul.f32 %v773, %v777
    %vm779 = vcmask 80896
    %v780 = vsel %vm779, %v778, -inf
    %781 = vmax.xlane.f32.xlu0 %v780
    %v782 = vpop.xlane.xlu0 %781
    %v783 = vsub.f32 %v778, %v782
    %v784 = vmul.f32 %v783, 1.442695
    %v785 = vpow.pop %v784
    %v786 = vsel %vm779, %v785, 0.0
    %787 = vadd.xlane.f32.xlu0 %v786
    %v788 = vpop.xlane.xlu0 %787
    %v789 = vrcp.pop %v788
    %v790 = vmul.f32 %v785, %v789
    %791 = vst.msk [vmem:[#allocation2] sm:$0xff] %vm779, %v790
    // Predicated region
    $region22: #{tpu_custom_call.1} parent=1 // pred_check
      _
    $region23: #{tpu_custom_call.1} parent=1 // pred_check_branch
      %793 = sbr.rel (0) target = $region25
    $region24: #{tpu_custom_call.1} parent=1 // pred_region
      %s795 = ssub.s32 128, 128
      %796 = vsyncadd [#allocation3], %s795
      %s798 = sshll.u32 [#allocation2], 4
      %s799 = int_to_ptr.vmem [resolvable:$true] %s798
      %801 = dma.vmem_to_hbm [thread:$0]  %s799, 128, %s5, [#allocation3]
    $region25: #{tpu_custom_call.1} parent=1 // pred_fallthru
      _
    // Predicated region
    $region26: #{tpu_custom_call.1} parent=1 // pred_check
      _
    $region27: #{tpu_custom_call.1} parent=1 // pred_check_branch
      %803 = sbr.rel (0) target = $region29
    $region28: #{tpu_custom_call.1} parent=1 // pred_region
      %804 = dma.done [#allocation3], 128
    $region29: #{tpu_custom_call.1} parent=1 // pred_fallthru
      _
    %805 = vsyncpa [#allocation3], 1

</llo_original>
